<compile_context>
chip_gen: v5e
topology: v5e:2x2
jax: 0.10.0
libtpu: 0.0.40
codegen_flags: <defaults>
</compile_context>

<pallas_src>
import jax
import jax.numpy as jnp
from jax import lax
from jax.experimental import pallas as pl
from jax.experimental.pallas import tpu as pltpu

INPUT_DIM = 5
OUTPUT_DIM = 4
# hidden_layers after the module's in-place `hidden_layers.append(output_dim)`:
LAYER_DIMS = [INPUT_DIM, 32, 64, 32, OUTPUT_DIM]


# ----------------------------------------------------------------------------- kernel

def _make_kernel(compute_dtype, x_feature_major):
    def kernel(x_ref,
               w0_ref, b0_ref, w1_ref, b1_ref, w2_ref, b2_ref, w3_ref, b3_ref,
               o_ref):
        x = x_ref[...].astype(compute_dtype)
        if x_feature_major:
            # x: (5, tile_b) feature-major (fallback path, wrapper transposed).
            h = jnp.dot(w0_ref[...], x, preferred_element_type=jnp.float32)
        else:
            # x: (tile_b, 5) batch-major, straight from HBM.  Contract the 5-feature
            # axis of both operands (== w0 @ x.T): layer 0 doubles as the
            # batch<->feature relayout and its output is feature-major (32, tile_b).
            h = lax.dot_general(w0_ref[...], x, (((1,), (1,)), ((), ())),
                                preferred_element_type=jnp.float32)
        h = jnp.maximum(h + b0_ref[...], 0.0)
        h = jnp.dot(w1_ref[...], h.astype(compute_dtype),
                    preferred_element_type=jnp.float32)
        h = jnp.maximum(h + b1_ref[...], 0.0)
        h = jnp.dot(w2_ref[...], h.astype(compute_dtype),
                    preferred_element_type=jnp.float32)
        h = jnp.maximum(h + b2_ref[...], 0.0)
        # Sign flip of output rows 1 and 2 is already folded into w3/b3 (wrapper).
        out = jnp.dot(w3_ref[...], h.astype(compute_dtype),
                      preferred_element_type=jnp.float32) + b3_ref[...]
        o_ref[...] = out.astype(o_ref.dtype)

    return kernel


# ---------------------------------------------------------------------------- helpers

def _round_up(n, m):
    return ((n + m - 1) // m) * m


def _pick_tile(batch, tile_b, min_steps):
    """Batch tile: multiple of 128 (lane-dense output stores), never larger than the
    batch once batch >= 128 (so blocks only spill past the array at the partial edge),
    and split into >= min_steps grid steps for large batches (v7x has 2 TensorCores
    and shards 'parallel' grid steps across them; harmless on v5e/v6e)."""
    tile_b = max(128, (int(tile_b) // 128) * 128)
    if batch >= 128:
        tile_b = min(tile_b, (batch // 128) * 128)
    else:
        tile_b = 128
    if min_steps > 1 and batch > min_steps * 1024:
        tile_b = min(tile_b, _round_up(-(-batch // min_steps), 128))
    return tile_b


def _vmem_limit_for_tile(tile_b):
    # Per-sample VMEM: batch-major input block (tile_b,5) lane-pads 5->128 = 512 B per
    # buffer (x2 double-buffered); output block (4,tile_b) sublane-pads 4->8 = 32 B per
    # buffer (x2); f32 feature-major intermediates ~ (32+64+32+16)*4 B.  2x headroom,
    # capped at 96 MiB (v5e/v6e: 128 MiB physical VMEM).  Keep tile_b <= ~16K when
    # targeting v7x's 64 MiB part.
    est = tile_b * (2 * 512 + 2 * 32 + 4 * (32 + 64 + 32 + 16))
    return int(min(96 * 2**20, max(32 * 2**20, 2 * est)))


def _prepare_params(params, matmul_dtype):
    """Feature-major params: W_fm = W.T (out, in) in matmul_dtype, b_fm (out, 1) f32.
    The NeuralReachCvx negation of output columns 1 and 2 is folded into layer 3."""
    flat = []
    last = len(params) - 1
    for li, (w, b) in enumerate(params):
        w_fm = jnp.transpose(w)                       # (out_dim, in_dim)
        b_fm = jnp.reshape(b, (-1, 1)).astype(jnp.float32)
        if li == last:
            sign = jnp.array([1.0, -1.0, -1.0, 1.0], jnp.float32)[:, None]
            w_fm = w_fm * sign
            b_fm = b_fm * sign
        flat.extend([w_fm.astype(matmul_dtype), b_fm])
    return flat


def _pallas_forward(x_arr, flat, *, x_feature_major, tile_b, nb,
                    vmem_limit_bytes, compute_dtype):
    grid = (pl.cdiv(nb, tile_b),)
    if x_feature_major:
        x_spec = pl.BlockSpec((INPUT_DIM, tile_b), lambda i: (0, i))
    else:
        x_spec = pl.BlockSpec((tile_b, INPUT_DIM), lambda i: (i, 0))
    # Weights/biases: full-shape blocks with constant index_maps -> DMA'd once,
    # VMEM-resident across all grid steps.
    in_specs = [x_spec] + [pl.BlockSpec(a.shape, lambda i: (0, 0)) for a in flat]
    return pl.pallas_call(
        _make_kernel(compute_dtype, x_feature_major),
        out_shape=jax.ShapeDtypeStruct((OUTPUT_DIM, nb), jnp.float32),
        grid=grid,
        in_specs=in_specs,
        out_specs=pl.BlockSpec((OUTPUT_DIM, tile_b), lambda i: (0, i)),
        compiler_params=pltpu.CompilerParams(
            dimension_semantics=("parallel",),
            vmem_limit_bytes=int(vmem_limit_bytes)),
    )(x_arr, *flat)


# ------------------------------------------------------------------------- public API

def neural_reach_cvx(x, params, *, tile_b=16384, min_steps=2,
                     matmul_dtype=jnp.float32, feature_major_output=False,
                     input_layout="auto", vmem_limit_bytes=None):
    """x: (B, 5) float32 -> (B, 4) float32 (or (4, B) if feature_major_output=True)."""
    batch = x.shape[0]
    assert x.shape[1] == INPUT_DIM
    tile_b = _pick_tile(batch, tile_b, min_steps)
    if vmem_limit_bytes is None:
        vmem_limit_bytes = _vmem_limit_for_tile(tile_b)

    flat = _prepare_params(params, matmul_dtype)

    # Tiny batches (< 128) are padded up to one 128-wide tile (negligible cost);
    # everything else runs unpadded with a partial edge block handled by Pallas.
    nb, x_in = batch, x
    if batch < tile_b:
        x_in = jnp.pad(x, ((0, tile_b - batch), (0, 0)))
        nb = tile_b

    def run(feature_major_x):
        xa = jnp.transpose(x_in) if feature_major_x else x_in
        return _pallas_forward(xa, flat, x_feature_major=feature_major_x,
                               tile_b=tile_b, nb=nb,
                               vmem_limit_bytes=vmem_limit_bytes,
                               compute_dtype=matmul_dtype)

    if input_layout == "batch_major":
        out_fm = run(False)
    elif input_layout == "feature_major":
        out_fm = run(True)
    else:
        # "auto": prefer the zero-copy batch-major path; fall back to a wrapper-side
        # transpose if this Mosaic build rejects the unaligned NT contraction.
        # (The probe only works in eager mode; under jit pick a layout explicitly.)
        try:
            out_fm = run(False)
        except Exception:
            out_fm = run(True)

    if nb != batch:
        out_fm = out_fm[:, :batch]
    if feature_major_output:
        return out_fm                 # (4, B): lane-dense, no extra HBM pass
    return jnp.transpose(out_fm)      # (B, 4): module's original interface


# --------------------------------------------------------------------- params / ref

def init_params(key):
    """Deterministic synthetic weights mirroring the module's __init__ shapes.
    main_layers: Linear(5,32), Linear(32,64), Linear(64,32), Linear(32,4);
    layers after the first have weights clamped to >= 0 (as in __init__).
    Stored batch-major: W (in_dim, out_dim), b (1, out_dim)."""
    params = []
    prev = LAYER_DIMS[0]
    for i, d in enumerate(LAYER_DIMS[1:]):
        key, kw, kb = jax.random.split(key, 3)
        w = jax.random.normal(kw, (prev, d), jnp.float32) * (1.0 / jnp.sqrt(prev))
        if i > 0:
            w = jnp.maximum(w, 0.0)  # clamp_(min=0) for non-first main layers
        b = jax.random.normal(kb, (1, d), jnp.float32) * 0.1
        params.append((w, b))
        prev = d
    # TODO(synk): additional_layers (Linear(5,{64,32,4})) and output_layer (Linear(4,4))
    # exist in __init__ but are dead in the reference forward; not instantiated here.
    return params


def reference_forward(x, params):
    h = x
    for i, (w, b) in enumerate(params):
        h = h @ w + b
        if i < len(params) - 1:
            h = jnp.maximum(h, 0.0)
    sign = jnp.array([1.0, -1.0, -1.0, 1.0], jnp.float32)
    return h * sign


# -------------------------------------------------------------------------------- main

if __name__ == "__main__":
    key = jax.random.PRNGKey(0)
    key, kx1, kx2 = jax.random.split(key, 3)
    params = init_params(key)

    # 1) Small primary test (tiny batch -> single 128-wide tile, f32 MXU path).
    B1 = 8
    x1 = jax.random.normal(kx1, (B1, INPUT_DIM), jnp.float32)
    out1 = jax.block_until_ready(neural_reach_cvx(x1, params))
    ref1 = reference_forward(x1, params)
    assert out1.shape == (B1, OUTPUT_DIM)
    assert jnp.allclose(out1, ref1, atol=5e-4, rtol=5e-4), "mismatch vs reference (B=8)"

    # 2) Multi-step grid with a partial edge block (no jnp.pad in the wrapper).
    B2 = 300
    x2 = jax.random.normal(kx2, (B2, INPUT_DIM), jnp.float32)
    out2 = jax.block_until_ready(neural_reach_cvx(x2, params, tile_b=128))
    ref2 = reference_forward(x2, params)
    assert out2.shape == (B2, OUTPUT_DIM)
    assert jnp.allclose(out2, ref2, atol=5e-4, rtol=5e-4), "mismatch vs reference (B=300)"

    # 3) bf16 MXU operands (f32 accumulation) + feature-major (4, B) output path.
    out3 = jax.block_until_ready(
        neural_reach_cvx(x2, params, matmul_dtype=jnp.bfloat16,
                         feature_major_output=True))
    assert out3.shape == (OUTPUT_DIM, B2)
    assert bool(jnp.all(jnp.isfinite(out3)))
    assert jnp.allclose(out3, ref2.T, atol=0.5, rtol=0.1), "bf16 path too far off"

    print("KERNEL_OK")
</pallas_src>

<mosaic_0001>
module attributes {stable_mosaic.version = 11 : i64} {
  func.func @kernel(%arg0: i32, %arg1: memref<128x5xf32, #tpu.memory_space<vmem>>, %arg2: memref<32x5xf32, #tpu.memory_space<vmem>>, %arg3: memref<32x1xf32, #tpu.memory_space<vmem>>, %arg4: memref<64x32xf32, #tpu.memory_space<vmem>>, %arg5: memref<64x1xf32, #tpu.memory_space<vmem>>, %arg6: memref<32x64xf32, #tpu.memory_space<vmem>>, %arg7: memref<32x1xf32, #tpu.memory_space<vmem>>, %arg8: memref<4x32xf32, #tpu.memory_space<vmem>>, %arg9: memref<4x1xf32, #tpu.memory_space<vmem>>, %arg10: memref<4x128xf32, #tpu.memory_space<vmem>>) attributes {dimension_semantics = [#tpu.dimension_semantics<parallel>], iteration_bounds = array<i64: 1>, scalar_prefetch = 0 : i64, scratch_operands = 0 : i64, tpu.core_type = #tpu.core_type<tc>, window_params = [{transform_indices = @transform_0, window_bounds = array<i64: 128, 5>}, {pipeline_mode = #tpu.pipeline_mode<synchronous>, transform_indices = @transform_1, window_bounds = array<i64: 32, 5>}, {pipeline_mode = #tpu.pipeline_mode<synchronous>, transform_indices = @transform_2, window_bounds = array<i64: 32, 1>}, {pipeline_mode = #tpu.pipeline_mode<synchronous>, transform_indices = @transform_3, window_bounds = array<i64: 64, 32>}, {pipeline_mode = #tpu.pipeline_mode<synchronous>, transform_indices = @transform_4, window_bounds = array<i64: 64, 1>}, {pipeline_mode = #tpu.pipeline_mode<synchronous>, transform_indices = @transform_5, window_bounds = array<i64: 32, 64>}, {pipeline_mode = #tpu.pipeline_mode<synchronous>, transform_indices = @transform_6, window_bounds = array<i64: 32, 1>}, {pipeline_mode = #tpu.pipeline_mode<synchronous>, transform_indices = @transform_7, window_bounds = array<i64: 4, 32>}, {pipeline_mode = #tpu.pipeline_mode<synchronous>, transform_indices = @transform_8, window_bounds = array<i64: 4, 1>}, {transform_indices = @transform_9, window_bounds = array<i64: 4, 128>}]} {
    %c0 = arith.constant 0 : index
    %c0_0 = arith.constant 0 : index
    %0 = vector.load %arg1[%c0, %c0_0] : memref<128x5xf32, #tpu.memory_space<vmem>>, vector<128x5xf32>
    %c0_1 = arith.constant 0 : index
    %c0_2 = arith.constant 0 : index
    %1 = vector.load %arg2[%c0_1, %c0_2] : memref<32x5xf32, #tpu.memory_space<vmem>>, vector<32x5xf32>
    %cst = arith.constant dense<0.000000e+00> : vector<32x128xf32>
    %2 = tpu.matmul %1, %0, %cst {dimension_numbers = #tpu.dot_dimension_numbers<[1], [1], [0], [0], [0, 0, 1, 0], [], []>} : vector<32x5xf32>, vector<128x5xf32>, vector<32x128xf32> -> vector<32x128xf32>
    %c0_3 = arith.constant 0 : index
    %c0_4 = arith.constant 0 : index
    %3 = vector.load %arg3[%c0_3, %c0_4] : memref<32x1xf32, #tpu.memory_space<vmem>>, vector<32x1xf32>
    %4 = vector.broadcast %3 : vector<32x1xf32> to vector<32x128xf32>
    %5 = arith.addf %2, %4 : vector<32x128xf32>
    %cst_5 = arith.constant 0.000000e+00 : f32
    %6 = vector.broadcast %cst_5 : f32 to vector<32x128xf32>
    %7 = arith.maximumf %5, %6 : vector<32x128xf32>
    %c0_6 = arith.constant 0 : index
    %c0_7 = arith.constant 0 : index
    %8 = vector.load %arg4[%c0_6, %c0_7] : memref<64x32xf32, #tpu.memory_space<vmem>>, vector<64x32xf32>
    %cst_8 = arith.constant dense<0.000000e+00> : vector<64x128xf32>
    %9 = tpu.matmul %8, %7, %cst_8 {dimension_numbers = #tpu.dot_dimension_numbers<[1], [0], [0], [1], [0, 0, 1, 1], [], []>} : vector<64x32xf32>, vector<32x128xf32>, vector<64x128xf32> -> vector<64x128xf32>
    %c0_9 = arith.constant 0 : index
    %c0_10 = arith.constant 0 : index
    %10 = vector.load %arg5[%c0_9, %c0_10] : memref<64x1xf32, #tpu.memory_space<vmem>>, vector<64x1xf32>
    %11 = vector.broadcast %10 : vector<64x1xf32> to vector<64x128xf32>
    %12 = arith.addf %9, %11 : vector<64x128xf32>
    %cst_11 = arith.constant 0.000000e+00 : f32
    %13 = vector.broadcast %cst_11 : f32 to vector<64x128xf32>
    %14 = arith.maximumf %12, %13 : vector<64x128xf32>
    %c0_12 = arith.constant 0 : index
    %c0_13 = arith.constant 0 : index
    %15 = vector.load %arg6[%c0_12, %c0_13] : memref<32x64xf32, #tpu.memory_space<vmem>>, vector<32x64xf32>
    %cst_14 = arith.constant dense<0.000000e+00> : vector<32x128xf32>
    %16 = tpu.matmul %15, %14, %cst_14 {dimension_numbers = #tpu.dot_dimension_numbers<[1], [0], [0], [1], [0, 0, 1, 1], [], []>} : vector<32x64xf32>, vector<64x128xf32>, vector<32x128xf32> -> vector<32x128xf32>
    %c0_15 = arith.constant 0 : index
    %c0_16 = arith.constant 0 : index
    %17 = vector.load %arg7[%c0_15, %c0_16] : memref<32x1xf32, #tpu.memory_space<vmem>>, vector<32x1xf32>
    %18 = vector.broadcast %17 : vector<32x1xf32> to vector<32x128xf32>
    %19 = arith.addf %16, %18 : vector<32x128xf32>
    %cst_17 = arith.constant 0.000000e+00 : f32
    %20 = vector.broadcast %cst_17 : f32 to vector<32x128xf32>
    %21 = arith.maximumf %19, %20 : vector<32x128xf32>
    %c0_18 = arith.constant 0 : index
    %c0_19 = arith.constant 0 : index
    %22 = vector.load %arg8[%c0_18, %c0_19] : memref<4x32xf32, #tpu.memory_space<vmem>>, vector<4x32xf32>
    %cst_20 = arith.constant dense<0.000000e+00> : vector<4x128xf32>
    %23 = tpu.matmul %22, %21, %cst_20 {dimension_numbers = #tpu.dot_dimension_numbers<[1], [0], [0], [1], [0, 0, 1, 1], [], []>} : vector<4x32xf32>, vector<32x128xf32>, vector<4x128xf32> -> vector<4x128xf32>
    %c0_21 = arith.constant 0 : index
    %c0_22 = arith.constant 0 : index
    %24 = vector.load %arg9[%c0_21, %c0_22] : memref<4x1xf32, #tpu.memory_space<vmem>>, vector<4x1xf32>
    %25 = vector.broadcast %24 : vector<4x1xf32> to vector<4x128xf32>
    %26 = arith.addf %23, %25 : vector<4x128xf32>
    %c0_23 = arith.constant 0 : index
    %c0_24 = arith.constant 0 : index
    %27 = vector.load %arg10[%c0_23, %c0_24] : memref<4x128xf32, #tpu.memory_space<vmem>>, vector<4x128xf32>
    tpu.vector_store %arg10[%c0_23, %c0_24], %26 {strides = array<i32>} : memref<4x128xf32, #tpu.memory_space<vmem>>, vector<4x128xf32>,
    return
  }
  func.func @transform_0(%arg0: i32) -> (i32, i32) {
    %c0_i32 = arith.constant 0 : i32
    %c0_i32_0 = arith.constant 0 : i32
    return %arg0, %c0_i32 : i32, i32
  }
  func.func @transform_1(%arg0: i32) -> (i32, i32) {
    %c0_i32 = arith.constant 0 : i32
    %c0_i32_0 = arith.constant 0 : i32
    %c0_i32_1 = arith.constant 0 : i32
    return %c0_i32, %c0_i32_0 : i32, i32
  }
  func.func @transform_2(%arg0: i32) -> (i32, i32) {
    %c0_i32 = arith.constant 0 : i32
    %c0_i32_0 = arith.constant 0 : i32
    %c0_i32_1 = arith.constant 0 : i32
    return %c0_i32, %c0_i32_0 : i32, i32
  }
  func.func @transform_3(%arg0: i32) -> (i32, i32) {
    %c0_i32 = arith.constant 0 : i32
    %c0_i32_0 = arith.constant 0 : i32
    %c0_i32_1 = arith.constant 0 : i32
    return %c0_i32, %c0_i32_0 : i32, i32
  }
  func.func @transform_4(%arg0: i32) -> (i32, i32) {
    %c0_i32 = arith.constant 0 : i32
    %c0_i32_0 = arith.constant 0 : i32
    %c0_i32_1 = arith.constant 0 : i32
    return %c0_i32, %c0_i32_0 : i32, i32
  }
  func.func @transform_5(%arg0: i32) -> (i32, i32) {
    %c0_i32 = arith.constant 0 : i32
    %c0_i32_0 = arith.constant 0 : i32
    %c0_i32_1 = arith.constant 0 : i32
    return %c0_i32, %c0_i32_0 : i32, i32
  }
  func.func @transform_6(%arg0: i32) -> (i32, i32) {
    %c0_i32 = arith.constant 0 : i32
    %c0_i32_0 = arith.constant 0 : i32
    %c0_i32_1 = arith.constant 0 : i32
    return %c0_i32, %c0_i32_0 : i32, i32
  }
  func.func @transform_7(%arg0: i32) -> (i32, i32) {
    %c0_i32 = arith.constant 0 : i32
    %c0_i32_0 = arith.constant 0 : i32
    %c0_i32_1 = arith.constant 0 : i32
    return %c0_i32, %c0_i32_0 : i32, i32
  }
  func.func @transform_8(%arg0: i32) -> (i32, i32) {
    %c0_i32 = arith.constant 0 : i32
    %c0_i32_0 = arith.constant 0 : i32
    %c0_i32_1 = arith.constant 0 : i32
    return %c0_i32, %c0_i32_0 : i32, i32
  }
  func.func @transform_9(%arg0: i32) -> (i32, i32) {
    %c0_i32 = arith.constant 0 : i32
    %c0_i32_0 = arith.constant 0 : i32
    return %c0_i32, %arg0 : i32, i32
  }
}

module attributes {stable_mosaic.version = 11 : i64} {
  func.func @kernel(%arg0: i32, %arg1: memref<5x128xf32, #tpu.memory_space<vmem>>, %arg2: memref<32x5xf32, #tpu.memory_space<vmem>>, %arg3: memref<32x1xf32, #tpu.memory_space<vmem>>, %arg4: memref<64x32xf32, #tpu.memory_space<vmem>>, %arg5: memref<64x1xf32, #tpu.memory_space<vmem>>, %arg6: memref<32x64xf32, #tpu.memory_space<vmem>>, %arg7: memref<32x1xf32, #tpu.memory_space<vmem>>, %arg8: memref<4x32xf32, #tpu.memory_space<vmem>>, %arg9: memref<4x1xf32, #tpu.memory_space<vmem>>, %arg10: memref<4x128xf32, #tpu.memory_space<vmem>>) attributes {dimension_semantics = [#tpu.dimension_semantics<parallel>], iteration_bounds = array<i64: 1>, scalar_prefetch = 0 : i64, scratch_operands = 0 : i64, tpu.core_type = #tpu.core_type<tc>, window_params = [{transform_indices = @transform_0, window_bounds = array<i64: 5, 128>}, {pipeline_mode = #tpu.pipeline_mode<synchronous>, transform_indices = @transform_1, window_bounds = array<i64: 32, 5>}, {pipeline_mode = #tpu.pipeline_mode<synchronous>, transform_indices = @transform_2, window_bounds = array<i64: 32, 1>}, {pipeline_mode = #tpu.pipeline_mode<synchronous>, transform_indices = @transform_3, window_bounds = array<i64: 64, 32>}, {pipeline_mode = #tpu.pipeline_mode<synchronous>, transform_indices = @transform_4, window_bounds = array<i64: 64, 1>}, {pipeline_mode = #tpu.pipeline_mode<synchronous>, transform_indices = @transform_5, window_bounds = array<i64: 32, 64>}, {pipeline_mode = #tpu.pipeline_mode<synchronous>, transform_indices = @transform_6, window_bounds = array<i64: 32, 1>}, {pipeline_mode = #tpu.pipeline_mode<synchronous>, transform_indices = @transform_7, window_bounds = array<i64: 4, 32>}, {pipeline_mode = #tpu.pipeline_mode<synchronous>, transform_indices = @transform_8, window_bounds = array<i64: 4, 1>}, {transform_indices = @transform_9, window_bounds = array<i64: 4, 128>}]} {
    %c0 = arith.constant 0 : index
    %c0_0 = arith.constant 0 : index
    %0 = vector.load %arg1[%c0, %c0_0] : memref<5x128xf32, #tpu.memory_space<vmem>>, vector<5x128xf32>
    %c0_1 = arith.constant 0 : index
    %c0_2 = arith.constant 0 : index
    %1 = vector.load %arg2[%c0_1, %c0_2] : memref<32x5xf32, #tpu.memory_space<vmem>>, vector<32x5xf32>
    %cst = arith.constant dense<0.000000e+00> : vector<32x128xf32>
    %2 = tpu.matmul %1, %0, %cst {dimension_numbers = #tpu.dot_dimension_numbers<[1], [0], [0], [1], [0, 0, 1, 1], [], []>} : vector<32x5xf32>, vector<5x128xf32>, vector<32x128xf32> -> vector<32x128xf32>
    %c0_3 = arith.constant 0 : index
    %c0_4 = arith.constant 0 : index
    %3 = vector.load %arg3[%c0_3, %c0_4] : memref<32x1xf32, #tpu.memory_space<vmem>>, vector<32x1xf32>
    %4 = vector.broadcast %3 : vector<32x1xf32> to vector<32x128xf32>
    %5 = arith.addf %2, %4 : vector<32x128xf32>
    %cst_5 = arith.constant 0.000000e+00 : f32
    %6 = vector.broadcast %cst_5 : f32 to vector<32x128xf32>
    %7 = arith.maximumf %5, %6 : vector<32x128xf32>
    %c0_6 = arith.constant 0 : index
    %c0_7 = arith.constant 0 : index
    %8 = vector.load %arg4[%c0_6, %c0_7] : memref<64x32xf32, #tpu.memory_space<vmem>>, vector<64x32xf32>
    %cst_8 = arith.constant dense<0.000000e+00> : vector<64x128xf32>
    %9 = tpu.matmul %8, %7, %cst_8 {dimension_numbers = #tpu.dot_dimension_numbers<[1], [0], [0], [1], [0, 0, 1, 1], [], []>} : vector<64x32xf32>, vector<32x128xf32>, vector<64x128xf32> -> vector<64x128xf32>
    %c0_9 = arith.constant 0 : index
    %c0_10 = arith.constant 0 : index
    %10 = vector.load %arg5[%c0_9, %c0_10] : memref<64x1xf32, #tpu.memory_space<vmem>>, vector<64x1xf32>
    %11 = vector.broadcast %10 : vector<64x1xf32> to vector<64x128xf32>
    %12 = arith.addf %9, %11 : vector<64x128xf32>
    %cst_11 = arith.constant 0.000000e+00 : f32
    %13 = vector.broadcast %cst_11 : f32 to vector<64x128xf32>
    %14 = arith.maximumf %12, %13 : vector<64x128xf32>
    %c0_12 = arith.constant 0 : index
    %c0_13 = arith.constant 0 : index
    %15 = vector.load %arg6[%c0_12, %c0_13] : memref<32x64xf32, #tpu.memory_space<vmem>>, vector<32x64xf32>
    %cst_14 = arith.constant dense<0.000000e+00> : vector<32x128xf32>
    %16 = tpu.matmul %15, %14, %cst_14 {dimension_numbers = #tpu.dot_dimension_numbers<[1], [0], [0], [1], [0, 0, 1, 1], [], []>} : vector<32x64xf32>, vector<64x128xf32>, vector<32x128xf32> -> vector<32x128xf32>
    %c0_15 = arith.constant 0 : index
    %c0_16 = arith.constant 0 : index
    %17 = vector.load %arg7[%c0_15, %c0_16] : memref<32x1xf32, #tpu.memory_space<vmem>>, vector<32x1xf32>
    %18 = vector.broadcast %17 : vector<32x1xf32> to vector<32x128xf32>
    %19 = arith.addf %16, %18 : vector<32x128xf32>
    %cst_17 = arith.constant 0.000000e+00 : f32
    %20 = vector.broadcast %cst_17 : f32 to vector<32x128xf32>
    %21 = arith.maximumf %19, %20 : vector<32x128xf32>
    %c0_18 = arith.constant 0 : index
    %c0_19 = arith.constant 0 : index
    %22 = vector.load %arg8[%c0_18, %c0_19] : memref<4x32xf32, #tpu.memory_space<vmem>>, vector<4x32xf32>
    %cst_20 = arith.constant dense<0.000000e+00> : vector<4x128xf32>
    %23 = tpu.matmul %22, %21, %cst_20 {dimension_numbers = #tpu.dot_dimension_numbers<[1], [0], [0], [1], [0, 0, 1, 1], [], []>} : vector<4x32xf32>, vector<32x128xf32>, vector<4x128xf32> -> vector<4x128xf32>
    %c0_21 = arith.constant 0 : index
    %c0_22 = arith.constant 0 : index
    %24 = vector.load %arg9[%c0_21, %c0_22] : memref<4x1xf32, #tpu.memory_space<vmem>>, vector<4x1xf32>
    %25 = vector.broadcast %24 : vector<4x1xf32> to vector<4x128xf32>
    %26 = arith.addf %23, %25 : vector<4x128xf32>
    %c0_23 = arith.constant 0 : index
    %c0_24 = arith.constant 0 : index
    %27 = vector.load %arg10[%c0_23, %c0_24] : memref<4x128xf32, #tpu.memory_space<vmem>>, vector<4x128xf32>
    tpu.vector_store %arg10[%c0_23, %c0_24], %26 {strides = array<i32>} : memref<4x128xf32, #tpu.memory_space<vmem>>, vector<4x128xf32>,
    return
  }
  func.func @transform_0(%arg0: i32) -> (i32, i32) {
    %c0_i32 = arith.constant 0 : i32
    %c0_i32_0 = arith.constant 0 : i32
    return %c0_i32, %arg0 : i32, i32
  }
  func.func @transform_1(%arg0: i32) -> (i32, i32) {
    %c0_i32 = arith.constant 0 : i32
    %c0_i32_0 = arith.constant 0 : i32
    %c0_i32_1 = arith.constant 0 : i32
    return %c0_i32, %c0_i32_0 : i32, i32
  }
  func.func @transform_2(%arg0: i32) -> (i32, i32) {
    %c0_i32 = arith.constant 0 : i32
    %c0_i32_0 = arith.constant 0 : i32
    %c0_i32_1 = arith.constant 0 : i32
    return %c0_i32, %c0_i32_0 : i32, i32
  }
  func.func @transform_3(%arg0: i32) -> (i32, i32) {
    %c0_i32 = arith.constant 0 : i32
    %c0_i32_0 = arith.constant 0 : i32
    %c0_i32_1 = arith.constant 0 : i32
    return %c0_i32, %c0_i32_0 : i32, i32
  }
  func.func @transform_4(%arg0: i32) -> (i32, i32) {
    %c0_i32 = arith.constant 0 : i32
    %c0_i32_0 = arith.constant 0 : i32
    %c0_i32_1 = arith.constant 0 : i32
    return %c0_i32, %c0_i32_0 : i32, i32
  }
  func.func @transform_5(%arg0: i32) -> (i32, i32) {
    %c0_i32 = arith.constant 0 : i32
    %c0_i32_0 = arith.constant 0 : i32
    %c0_i32_1 = arith.constant 0 : i32
    return %c0_i32, %c0_i32_0 : i32, i32
  }
  func.func @transform_6(%arg0: i32) -> (i32, i32) {
    %c0_i32 = arith.constant 0 : i32
    %c0_i32_0 = arith.constant 0 : i32
    %c0_i32_1 = arith.constant 0 : i32
    return %c0_i32, %c0_i32_0 : i32, i32
  }
  func.func @transform_7(%arg0: i32) -> (i32, i32) {
    %c0_i32 = arith.constant 0 : i32
    %c0_i32_0 = arith.constant 0 : i32
    %c0_i32_1 = arith.constant 0 : i32
    return %c0_i32, %c0_i32_0 : i32, i32
  }
  func.func @transform_8(%arg0: i32) -> (i32, i32) {
    %c0_i32 = arith.constant 0 : i32
    %c0_i32_0 = arith.constant 0 : i32
    %c0_i32_1 = arith.constant 0 : i32
    return %c0_i32, %c0_i32_0 : i32, i32
  }
  func.func @transform_9(%arg0: i32) -> (i32, i32) {
    %c0_i32 = arith.constant 0 : i32
    %c0_i32_0 = arith.constant 0 : i32
    return %c0_i32, %arg0 : i32, i32
  }
}

</mosaic_0001>

<llo_original>
// kernel: tpu_custom_call.1
$region0: #{tpu_custom_call.1}
  #allocation0 [shape = 'u32[]', space=smem, size = 0x4, offset = 0x4, fixed_abs, tag = 'smem constant byte address 0x4 - core index']
  #allocation1 [shape = 'u32[72,128]{1,0:T(1,128)}', space=vmem, size = 0x9000, scoped, tag = 'internal scratch']
  %s0 = inlined_call_operand.vmem [shape: f32[128,5], index: 0, kind: input, shape index: {}]
  %s1 = inlined_call_operand.vmem [shape: f32[32,5], index: 1, kind: input, shape index: {}]
  %s2 = inlined_call_operand.vmem [shape: f32[32,1], index: 2, kind: input, shape index: {}]
  %s3 = inlined_call_operand.vmem [shape: f32[64,32], index: 3, kind: input, shape index: {}]
  %s4 = inlined_call_operand.vmem [shape: f32[64,1], index: 4, kind: input, shape index: {}]
  %s5 = inlined_call_operand.vmem [shape: f32[32,64], index: 5, kind: input, shape index: {}]
  %s6 = inlined_call_operand.vmem [shape: f32[32,1], index: 6, kind: input, shape index: {}]
  %s7 = inlined_call_operand.vmem [shape: f32[4,32], index: 7, kind: input, shape index: {}]
  %s8 = inlined_call_operand.vmem [shape: f32[4,1], index: 8, kind: input, shape index: {}]
  %s9 = inlined_call_operand.hbm [shape: f32[4,128], index: 9, kind: output, shape index: {}]
  %s10 = sld [smem:[#allocation0]]
  $region46: #{tpu_custom_call.1} parent=0
    _
  %s12 = ssub.s32 1, %s10
  %s13 = scalar_select 0, %s12, %s10
  $region1: #{tpu_custom_call.1} parent=0
    #allocation2 [shape = 'u8[2048]{0}', space=vmem, size = 0x800, scoped, tag = 'output window, operand 0, single buffered']
    #allocation3 [shape = 's32[1]{0}', space=sflag, size = 0x4, scoped, tag = 'scoped memory for tpu_custom_call.1']
    %14 = vsyncpa [#allocation3], 0
    // Predicated region
    $region2: #{tpu_custom_call.1} parent=1 // pred_check
      _
    $region3: #{tpu_custom_call.1} parent=1 // pred_check_branch
      %16 = sbr.rel (0) target = $region5
    $region4: #{tpu_custom_call.1} parent=1 // pred_region
      _
    $region5: #{tpu_custom_call.1} parent=1 // pred_fallthru
      _
    // Predicated region
    $region6: #{tpu_custom_call.1} parent=1 // pred_check
      _
    $region7: #{tpu_custom_call.1} parent=1 // pred_check_branch
      %18 = sbr.rel (0) target = $region9
    $region8: #{tpu_custom_call.1} parent=1 // pred_region
      _
    $region9: #{tpu_custom_call.1} parent=1 // pred_fallthru
      _
    // Predicated region
    $region10: #{tpu_custom_call.1} parent=1 // pred_check
      _
    $region11: #{tpu_custom_call.1} parent=1 // pred_check_branch
      %20 = sbr.rel (0) target = $region13
    $region12: #{tpu_custom_call.1} parent=1 // pred_region
      _
    $region13: #{tpu_custom_call.1} parent=1 // pred_fallthru
      _
    // Predicated region
    $region14: #{tpu_custom_call.1} parent=1 // pred_check
      _
    $region15: #{tpu_custom_call.1} parent=1 // pred_check_branch
      %22 = sbr.rel (0) target = $region17
    $region16: #{tpu_custom_call.1} parent=1 // pred_region
      _
    $region17: #{tpu_custom_call.1} parent=1 // pred_fallthru
      _
    // Predicated region
    $region18: #{tpu_custom_call.1} parent=1 // pred_check
      _
    $region19: #{tpu_custom_call.1} parent=1 // pred_check_branch
      %24 = sbr.rel (0) target = $region21
    $region20: #{tpu_custom_call.1} parent=1 // pred_region
      _
    $region21: #{tpu_custom_call.1} parent=1 // pred_fallthru
      _
    // Predicated region
    $region22: #{tpu_custom_call.1} parent=1 // pred_check
      _
    $region23: #{tpu_custom_call.1} parent=1 // pred_check_branch
      %26 = sbr.rel (0) target = $region25
    $region24: #{tpu_custom_call.1} parent=1 // pred_region
      _
    $region25: #{tpu_custom_call.1} parent=1 // pred_fallthru
      _
    // Predicated region
    $region26: #{tpu_custom_call.1} parent=1 // pred_check
      _
    $region27: #{tpu_custom_call.1} parent=1 // pred_check_branch
      %28 = sbr.rel (0) target = $region29
    $region28: #{tpu_custom_call.1} parent=1 // pred_region
      _
    $region29: #{tpu_custom_call.1} parent=1 // pred_fallthru
      _
    // Predicated region
    $region30: #{tpu_custom_call.1} parent=1 // pred_check
      _
    $region31: #{tpu_custom_call.1} parent=1 // pred_check_branch
      %30 = sbr.rel (0) target = $region33
    $region32: #{tpu_custom_call.1} parent=1 // pred_region
      _
    $region33: #{tpu_custom_call.1} parent=1 // pred_fallthru
      _
    // Predicated region
    $region34: #{tpu_custom_call.1} parent=1 // pred_check
      _
    $region35: #{tpu_custom_call.1} parent=1 // pred_check_branch
      %32 = sbr.rel (0) target = $region37
    $region36: #{tpu_custom_call.1} parent=1 // pred_region
      _
    $region37: #{tpu_custom_call.1} parent=1 // pred_fallthru
      _
    %v33 = vld [vmem:[%s0] sm:$0xff]
    %v34 = vld [vmem:[%s0 + $0x8] sm:$0xff]
    %v35 = vld [vmem:[%s0 + $0x10] sm:$0xff]
    %v36 = vld [vmem:[%s0 + $0x18] sm:$0xff]
    %v37 = vld [vmem:[%s0 + $0x20] sm:$0xff]
    %v38 = vld [vmem:[%s0 + $0x28] sm:$0xff]
    %v39 = vld [vmem:[%s0 + $0x30] sm:$0xff]
    %v40 = vld [vmem:[%s0 + $0x38] sm:$0xff]
    %v41 = vld [vmem:[%s0 + $0x40] sm:$0xff]
    %v42 = vld [vmem:[%s0 + $0x48] sm:$0xff]
    %v43 = vld [vmem:[%s0 + $0x50] sm:$0xff]
    %v44 = vld [vmem:[%s0 + $0x58] sm:$0xff]
    %v45 = vld [vmem:[%s0 + $0x60] sm:$0xff]
    %v46 = vld [vmem:[%s0 + $0x68] sm:$0xff]
    %v47 = vld [vmem:[%s0 + $0x70] sm:$0xff]
    %v48 = vld [vmem:[%s0 + $0x78] sm:$0xff]
    %v49 = vld [vmem:[%s1] sm:$0xff]
    %v50 = vld [vmem:[%s1 + $0x8] sm:$0xff]
    %v51 = vld [vmem:[%s1 + $0x10] sm:$0xff]
    %v52 = vld [vmem:[%s1 + $0x18] sm:$0xff]
    %v53 = vld [vmem:[%s2] sm:$0xff]
    %v54 = vld [vmem:[%s2 + $0x8] sm:$0xff]
    %v55 = vld [vmem:[%s2 + $0x10] sm:$0xff]
    %v56 = vld [vmem:[%s2 + $0x18] sm:$0xff]
    %58 = vset.pattern.permute.xlu0 0
    %59 = vperm.xlu0 %58, %v53
    %v60 = vpop.permute.xlu0 %59
    %63 = vset.pattern.permute.xlu0 0
    %64 = vperm.xlu0 %63, %v54
    %v65 = vpop.permute.xlu0 %64
    %68 = vset.pattern.permute.xlu0 0
    %69 = vperm.xlu0 %68, %v55
    %v70 = vpop.permute.xlu0 %69
    %73 = vset.pattern.permute.xlu0 0
    %74 = vperm.xlu0 %73, %v56
    %v75 = vpop.permute.xlu0 %74
    %vm77 = vcmask 39936
    %v79 = vsel %vm77, %v49, 0
    %v82 = vsel %vm77, %v50, 0
    %v85 = vsel %vm77, %v51, 0
    %v88 = vsel %vm77, %v52, 0
    %v91 = vsel %vm77, %v33, 0
    %v94 = vsel %vm77, %v34, 0
    %v97 = vsel %vm77, %v35, 0
    %v100 = vsel %vm77, %v36, 0
    %v103 = vsel %vm77, %v37, 0
    %v106 = vsel %vm77, %v38, 0
    %v109 = vsel %vm77, %v39, 0
    %v112 = vsel %vm77, %v40, 0
    %v115 = vsel %vm77, %v41, 0
    %v118 = vsel %vm77, %v42, 0
    %v121 = vsel %vm77, %v43, 0
    %v124 = vsel %vm77, %v44, 0
    %v127 = vsel %vm77, %v45, 0
    %v130 = vsel %vm77, %v46, 0
    %v133 = vsel %vm77, %v47, 0
    %v136 = vsel %vm77, %v48, 0
    %138 = vmatpush.xpose.msra.mxu0 %v136
    %139 = vmatpush.xpose.msra.mxu0 %v133
    %140 = vmatpush.xpose.msra.mxu0 %v130
    %141 = vmatpush.xpose.msra.mxu0 %v127
    %142 = vmatpush.xpose.msra.mxu0 %v124
    %143 = vmatpush.xpose.msra.mxu0 %v121
    %144 = vmatpush.xpose.msra.mxu0 %v118
    %145 = vmatpush.xpose.msra.mxu0 %v115
    %146 = vmatpush.xpose.msra.mxu0 %v112
    %147 = vmatpush.xpose.msra.mxu0 %v109
    %148 = vmatpush.xpose.msra.mxu0 %v106
    %149 = vmatpush.xpose.msra.mxu0 %v103
    %150 = vmatpush.xpose.msra.mxu0 %v100
    %151 = vmatpush.xpose.msra.mxu0 %v97
    %152 = vmatpush.xpose.msra.mxu0 %v94
    %153 = vmatpush.xpose.msra.mxu0 %v91
    %154 = vmatmul.f32.gmra.mxu0 %v79
    %v155 = vpop.f32.mrf.mxu0
    %v156 = vadd.f32 %v60, %v155
    %157 = vmatmul.f32.gmra.mxu0 %v82
    %v158 = vpop.f32.mrf.mxu0
    %v159 = vadd.f32 %v65, %v158
    %160 = vmatmul.f32.gmra.mxu0 %v85
    %v161 = vpop.f32.mrf.mxu0
    %v162 = vadd.f32 %v70, %v161
    %163 = vmatmul.f32.gmra.mxu0 %v88
    %v164 = vpop.f32.mrf.mxu0
    %v165 = vadd.f32 %v75, %v164
    %166 = vdwg.mxu0
    %v167 = vmax.f32 %v156, 0.0
    %v168 = vmax.f32 %v159, 0.0
    %v169 = vmax.f32 %v162, 0.0
    %v170 = vmax.f32 %v165, 0.0
    %v171 = vld [vmem:[%s3] sm:$0xff]
    %v172 = vld [vmem:[%s3 + $0x8] sm:$0xff]
    %v173 = vld [vmem:[%s3 + $0x10] sm:$0xff]
    %v174 = vld [vmem:[%s3 + $0x18] sm:$0xff]
    %v175 = vld [vmem:[%s3 + $0x20] sm:$0xff]
    %v176 = vld [vmem:[%s3 + $0x28] sm:$0xff]
    %v177 = vld [vmem:[%s3 + $0x30] sm:$0xff]
    %v178 = vld [vmem:[%s3 + $0x38] sm:$0xff]
    %v179 = vld [vmem:[%s4] sm:$0xff]
    %v180 = vld [vmem:[%s4 + $0x8] sm:$0xff]
    %v181 = vld [vmem:[%s4 + $0x10] sm:$0xff]
    %v182 = vld [vmem:[%s4 + $0x18] sm:$0xff]
    %v183 = vld [vmem:[%s4 + $0x20] sm:$0xff]
    %v184 = vld [vmem:[%s4 + $0x28] sm:$0xff]
    %v185 = vld [vmem:[%s4 + $0x30] sm:$0xff]
    %v186 = vld [vmem:[%s4 + $0x38] sm:$0xff]
    %188 = vset.pattern.permute.xlu0 0
    %189 = vperm.xlu0 %188, %v179
    %v190 = vpop.permute.xlu0 %189
    %193 = vset.pattern.permute.xlu0 0
    %194 = vperm.xlu0 %193, %v180
    %v195 = vpop.permute.xlu0 %194
    %198 = vset.pattern.permute.xlu0 0
    %199 = vperm.xlu0 %198, %v181
    %v200 = vpop.permute.xlu0 %199
    %203 = vset.pattern.permute.xlu0 0
    %204 = vperm.xlu0 %203, %v182
    %v205 = vpop.permute.xlu0 %204
    %208 = vset.pattern.permute.xlu0 0
    %209 = vperm.xlu0 %208, %v183
    %v210 = vpop.permute.xlu0 %209
    %213 = vset.pattern.permute.xlu0 0
    %214 = vperm.xlu0 %213, %v184
    %v215 = vpop.permute.xlu0 %214
    %218 = vset.pattern.permute.xlu0 0
    %219 = vperm.xlu0 %218, %v185
    %v220 = vpop.permute.xlu0 %219
    %223 = vset.pattern.permute.xlu0 0
    %224 = vperm.xlu0 %223, %v186
    %v225 = vpop.permute.xlu0 %224
    %vm227 = vcmask 261120
    %v229 = vsel %vm227, %v171, 0
    %v232 = vsel %vm227, %v172, 0
    %v235 = vsel %vm227, %v173, 0
    %v238 = vsel %vm227, %v174, 0
    %v241 = vsel %vm227, %v175, 0
    %v244 = vsel %vm227, %v176, 0
    %v247 = vsel %vm227, %v177, 0
    %v250 = vsel %vm227, %v178, 0
    %252 = vmatpush.msra.mxu0 0.0
    %253 = vmatpush.msra.mxu0 0.0
    %254 = vmatpush.msra.mxu0 0.0
    %255 = vmatpush.msra.mxu0 0.0
    %256 = vmatpush.msra.mxu0 0.0
    %257 = vmatpush.msra.mxu0 0.0
    %258 = vmatpush.msra.mxu0 0.0
    %259 = vmatpush.msra.mxu0 0.0
    %260 = vmatpush.msra.mxu0 0.0
    %261 = vmatpush.msra.mxu0 0.0
    %262 = vmatpush.msra.mxu0 0.0
    %263 = vmatpush.msra.mxu0 0.0
    %264 = vmatpush.msra.mxu0 %v170
    %265 = vmatpush.msra.mxu0 %v169
    %266 = vmatpush.msra.mxu0 %v168
    %267 = vmatpush.msra.mxu0 %v167
    %268 = vmatmul.f32.gmra.mxu0 %v229
    %v269 = vpop.f32.mrf.mxu0
    %v270 = vadd.f32 %v190, %v269
    %271 = vmatmul.f32.gmra.mxu0 %v232
    %v272 = vpop.f32.mrf.mxu0
    %v273 = vadd.f32 %v195, %v272
    %274 = vmatmul.f32.gmra.mxu0 %v235
    %v275 = vpop.f32.mrf.mxu0
    %v276 = vadd.f32 %v200, %v275
    %277 = vmatmul.f32.gmra.mxu0 %v238
    %v278 = vpop.f32.mrf.mxu0
    %v279 = vadd.f32 %v205, %v278
    %280 = vmatmul.f32.gmra.mxu0 %v241
    %v281 = vpop.f32.mrf.mxu0
    %v282 = vadd.f32 %v210, %v281
    %283 = vmatmul.f32.gmra.mxu0 %v244
    %v284 = vpop.f32.mrf.mxu0
    %v285 = vadd.f32 %v215, %v284
    %286 = vmatmul.f32.gmra.mxu0 %v247
    %v287 = vpop.f32.mrf.mxu0
    %v288 = vadd.f32 %v220, %v287
    %289 = vmatmul.f32.gmra.mxu0 %v250
    %v290 = vpop.f32.mrf.mxu0
    %v291 = vadd.f32 %v225, %v290
    %292 = vdwg.mxu0
    %v293 = vmax.f32 %v270, 0.0
    %v294 = vmax.f32 %v273, 0.0
    %v295 = vmax.f32 %v276, 0.0
    %v296 = vmax.f32 %v279, 0.0
    %v297 = vmax.f32 %v282, 0.0
    %v298 = vmax.f32 %v285, 0.0
    %v299 = vmax.f32 %v288, 0.0
    %v300 = vmax.f32 %v291, 0.0
    %v301 = vld [vmem:[%s5] sm:$0xff]
    %v302 = vld [vmem:[%s5 + $0x8] sm:$0xff]
    %v303 = vld [vmem:[%s5 + $0x10] sm:$0xff]
    %v304 = vld [vmem:[%s5 + $0x18] sm:$0xff]
    %v305 = vld [vmem:[%s6] sm:$0xff]
    %v306 = vld [vmem:[%s6 + $0x8] sm:$0xff]
    %v307 = vld [vmem:[%s6 + $0x10] sm:$0xff]
    %v308 = vld [vmem:[%s6 + $0x18] sm:$0xff]
    %310 = vset.pattern.permute.xlu0 0
    %311 = vperm.xlu0 %310, %v305
    %v312 = vpop.permute.xlu0 %311
    %315 = vset.pattern.permute.xlu0 0
    %316 = vperm.xlu0 %315, %v306
    %v317 = vpop.permute.xlu0 %316
    %320 = vset.pattern.permute.xlu0 0
    %321 = vperm.xlu0 %320, %v307
    %v322 = vpop.permute.xlu0 %321
    %325 = vset.pattern.permute.xlu0 0
    %326 = vperm.xlu0 %325, %v308
    %v327 = vpop.permute.xlu0 %326
    %vm329 = vcmask 523264
    %v331 = vsel %vm329, %v301, 0
    %v334 = vsel %vm329, %v302, 0
    %v337 = vsel %vm329, %v303, 0
    %v340 = vsel %vm329, %v304, 0
    %342 = vmatpush.msra.mxu0 0.0
    %343 = vmatpush.msra.mxu0 0.0
    %344 = vmatpush.msra.mxu0 0.0
    %345 = vmatpush.msra.mxu0 0.0
    %346 = vmatpush.msra.mxu0 0.0
    %347 = vmatpush.msra.mxu0 0.0
    %348 = vmatpush.msra.mxu0 0.0
    %349 = vmatpush.msra.mxu0 0.0
    %350 = vmatpush.msra.mxu0 %v300
    %351 = vmatpush.msra.mxu0 %v299
    %352 = vmatpush.msra.mxu0 %v298
    %353 = vmatpush.msra.mxu0 %v297
    %354 = vmatpush.msra.mxu0 %v296
    %355 = vmatpush.msra.mxu0 %v295
    %356 = vmatpush.msra.mxu0 %v294
    %357 = vmatpush.msra.mxu0 %v293
    %358 = vmatmul.f32.gmra.mxu0 %v331
    %v359 = vpop.f32.mrf.mxu0
    %v360 = vadd.f32 %v312, %v359
    %361 = vmatmul.f32.gmra.mxu0 %v334
    %v362 = vpop.f32.mrf.mxu0
    %v363 = vadd.f32 %v317, %v362
    %364 = vmatmul.f32.gmra.mxu0 %v337
    %v365 = vpop.f32.mrf.mxu0
    %v366 = vadd.f32 %v322, %v365
    %367 = vmatmul.f32.gmra.mxu0 %v340
    %v368 = vpop.f32.mrf.mxu0
    %v369 = vadd.f32 %v327, %v368
    %370 = vdwg.mxu0
    %v371 = vmax.f32 %v360, 0.0
    %v372 = vmax.f32 %v363, 0.0
    %v373 = vmax.f32 %v366, 0.0
    %v374 = vmax.f32 %v369, 0.0
    %v375 = vld [vmem:[%s7] sm:$0xf]
    %v376 = vld [vmem:[%s8] sm:$0xf]
    %378 = vset.pattern.permute.xlu0 0
    %379 = vperm.xlu0 %378, %v376
    %v380 = vpop.permute.xlu0 %379
    %v383 = vsel %vm227, %v375, 0
    %385 = vmatpush.msra.mxu0 0.0
    %386 = vmatpush.msra.mxu0 0.0
    %387 = vmatpush.msra.mxu0 0.0
    %388 = vmatpush.msra.mxu0 0.0
    %389 = vmatpush.msra.mxu0 0.0
    %390 = vmatpush.msra.mxu0 0.0
    %391 = vmatpush.msra.mxu0 0.0
    %392 = vmatpush.msra.mxu0 0.0
    %393 = vmatpush.msra.mxu0 0.0
    %394 = vmatpush.msra.mxu0 0.0
    %395 = vmatpush.msra.mxu0 0.0
    %396 = vmatpush.msra.mxu0 0.0
    %397 = vmatpush.msra.mxu0 %v374
    %398 = vmatpush.msra.mxu0 %v373
    %399 = vmatpush.msra.mxu0 %v372
    %400 = vmatpush.msra.mxu0 %v371
    %401 = vmatmul.f32.gmra.mxu0 %v383
    %v402 = vpop.f32.mrf.mxu0
    %v403 = vadd.f32 %v380, %v402
    %404 = vdwg.mxu0
    %405 = vst [vmem:[#allocation2] sm:$0xf] %v403
    // Predicated region
    $region38: #{tpu_custom_call.1} parent=1 // pred_check
      _
    $region39: #{tpu_custom_call.1} parent=1 // pred_check_branch
      %407 = sbr.rel (0) target = $region41
    $region40: #{tpu_custom_call.1} parent=1 // pred_region
      %409 = vsyncadd [#allocation3], 0
      %s411 = sshll.u32 [#allocation2], 4
      %s412 = int_to_ptr.vmem [resolvable:$true] %s411
      %s413 = sshll.u32 %s9, 4
      %s414 = int_to_ptr.hbm [resolvable:$true] %s413
      %416 = dma.vmem_to_hbm [thread:$0]  %s412, 64, %s414, [#allocation3]
    $region41: #{tpu_custom_call.1} parent=1 // pred_fallthru
      _
    // Predicated region
    $region42: #{tpu_custom_call.1} parent=1 // pred_check
      _
    $region43: #{tpu_custom_call.1} parent=1 // pred_check_branch
      %418 = sbr.rel (0) target = $region45
    $region44: #{tpu_custom_call.1} parent=1 // pred_region
      %420 = dma.done [#allocation3], 64
    $region45: #{tpu_custom_call.1} parent=1 // pred_fallthru
      _
    %421 = vsyncpa [#allocation3], 1

// kernel: tpu_custom_call.1
$region0: #{tpu_custom_call.1}
  #allocation0 [shape = 'u32[]', space=smem, size = 0x4, offset = 0x4, fixed_abs, tag = 'smem constant byte address 0x4 - core index']
  #allocation1 [shape = 'u32[72,128]{1,0:T(1,128)}', space=vmem, size = 0x9000, scoped, tag = 'internal scratch']
  %s0 = inlined_call_operand.vmem [shape: f32[5,128], index: 0, kind: input, shape index: {}]
  %s1 = inlined_call_operand.vmem [shape: f32[32,5], index: 1, kind: input, shape index: {}]
  %s2 = inlined_call_operand.vmem [shape: f32[32,1], index: 2, kind: input, shape index: {}]
  %s3 = inlined_call_operand.vmem [shape: f32[64,32], index: 3, kind: input, shape index: {}]
  %s4 = inlined_call_operand.vmem [shape: f32[64,1], index: 4, kind: input, shape index: {}]
  %s5 = inlined_call_operand.vmem [shape: f32[32,64], index: 5, kind: input, shape index: {}]
  %s6 = inlined_call_operand.vmem [shape: f32[32,1], index: 6, kind: input, shape index: {}]
  %s7 = inlined_call_operand.vmem [shape: f32[4,32], index: 7, kind: input, shape index: {}]
  %s8 = inlined_call_operand.vmem [shape: f32[4,1], index: 8, kind: input, shape index: {}]
  %s9 = inlined_call_operand.hbm [shape: f32[4,128], index: 9, kind: output, shape index: {}]
  %s10 = sld [smem:[#allocation0]]
  $region46: #{tpu_custom_call.1} parent=0
    _
  %s12 = ssub.s32 1, %s10
  %s13 = scalar_select 0, %s12, %s10
  $region1: #{tpu_custom_call.1} parent=0
    #allocation2 [shape = 'u8[2048]{0}', space=vmem, size = 0x800, scoped, tag = 'output window, operand 0, single buffered']
    #allocation3 [shape = 's32[1]{0}', space=sflag, size = 0x4, scoped, tag = 'scoped memory for tpu_custom_call.1']
    %14 = vsyncpa [#allocation3], 0
    // Predicated region
    $region2: #{tpu_custom_call.1} parent=1 // pred_check
      _
    $region3: #{tpu_custom_call.1} parent=1 // pred_check_branch
      %16 = sbr.rel (0) target = $region5
    $region4: #{tpu_custom_call.1} parent=1 // pred_region
      _
    $region5: #{tpu_custom_call.1} parent=1 // pred_fallthru
      _
    // Predicated region
    $region6: #{tpu_custom_call.1} parent=1 // pred_check
      _
    $region7: #{tpu_custom_call.1} parent=1 // pred_check_branch
      %18 = sbr.rel (0) target = $region9
    $region8: #{tpu_custom_call.1} parent=1 // pred_region
      _
    $region9: #{tpu_custom_call.1} parent=1 // pred_fallthru
      _
    // Predicated region
    $region10: #{tpu_custom_call.1} parent=1 // pred_check
      _
    $region11: #{tpu_custom_call.1} parent=1 // pred_check_branch
      %20 = sbr.rel (0) target = $region13
    $region12: #{tpu_custom_call.1} parent=1 // pred_region
      _
    $region13: #{tpu_custom_call.1} parent=1 // pred_fallthru
      _
    // Predicated region
    $region14: #{tpu_custom_call.1} parent=1 // pred_check
      _
    $region15: #{tpu_custom_call.1} parent=1 // pred_check_branch
      %22 = sbr.rel (0) target = $region17
    $region16: #{tpu_custom_call.1} parent=1 // pred_region
      _
    $region17: #{tpu_custom_call.1} parent=1 // pred_fallthru
      _
    // Predicated region
    $region18: #{tpu_custom_call.1} parent=1 // pred_check
      _
    $region19: #{tpu_custom_call.1} parent=1 // pred_check_branch
      %24 = sbr.rel (0) target = $region21
    $region20: #{tpu_custom_call.1} parent=1 // pred_region
      _
    $region21: #{tpu_custom_call.1} parent=1 // pred_fallthru
      _
    // Predicated region
    $region22: #{tpu_custom_call.1} parent=1 // pred_check
      _
    $region23: #{tpu_custom_call.1} parent=1 // pred_check_branch
      %26 = sbr.rel (0) target = $region25
    $region24: #{tpu_custom_call.1} parent=1 // pred_region
      _
    $region25: #{tpu_custom_call.1} parent=1 // pred_fallthru
      _
    // Predicated region
    $region26: #{tpu_custom_call.1} parent=1 // pred_check
      _
    $region27: #{tpu_custom_call.1} parent=1 // pred_check_branch
      %28 = sbr.rel (0) target = $region29
    $region28: #{tpu_custom_call.1} parent=1 // pred_region
      _
    $region29: #{tpu_custom_call.1} parent=1 // pred_fallthru
      _
    // Predicated region
    $region30: #{tpu_custom_call.1} parent=1 // pred_check
      _
    $region31: #{tpu_custom_call.1} parent=1 // pred_check_branch
      %30 = sbr.rel (0) target = $region33
    $region32: #{tpu_custom_call.1} parent=1 // pred_region
      _
    $region33: #{tpu_custom_call.1} parent=1 // pred_fallthru
      _
    // Predicated region
    $region34: #{tpu_custom_call.1} parent=1 // pred_check
      _
    $region35: #{tpu_custom_call.1} parent=1 // pred_check_branch
      %32 = sbr.rel (0) target = $region37
    $region36: #{tpu_custom_call.1} parent=1 // pred_region
      _
    $region37: #{tpu_custom_call.1} parent=1 // pred_fallthru
      _
    %v33 = vld [vmem:[%s0] sm:$0x1f]
    %v34 = vld [vmem:[%s1] sm:$0xff]
    %v35 = vld [vmem:[%s1 + $0x8] sm:$0xff]
    %v36 = vld [vmem:[%s1 + $0x10] sm:$0xff]
    %v37 = vld [vmem:[%s1 + $0x18] sm:$0xff]
    %v38 = vld [vmem:[%s2] sm:$0xff]
    %v39 = vld [vmem:[%s2 + $0x8] sm:$0xff]
    %v40 = vld [vmem:[%s2 + $0x10] sm:$0xff]
    %v41 = vld [vmem:[%s2 + $0x18] sm:$0xff]
    %43 = vset.pattern.permute.xlu0 0
    %44 = vperm.xlu0 %43, %v38
    %v45 = vpop.permute.xlu0 %44
    %48 = vset.pattern.permute.xlu0 0
    %49 = vperm.xlu0 %48, %v39
    %v50 = vpop.permute.xlu0 %49
    %53 = vset.pattern.permute.xlu0 0
    %54 = vperm.xlu0 %53, %v40
    %v55 = vpop.permute.xlu0 %54
    %58 = vset.pattern.permute.xlu0 0
    %59 = vperm.xlu0 %58, %v41
    %v60 = vpop.permute.xlu0 %59
    %vm62 = vcmask 39936
    %v64 = vsel %vm62, %v34, 0
    %v67 = vsel %vm62, %v35, 0
    %v70 = vsel %vm62, %v36, 0
    %v73 = vsel %vm62, %v37, 0
    %vm75 = vcmask 1044480
    %v77 = vsel %vm75, %v33, 0
    %79 = vmatpush.msra.mxu0 0.0
    %80 = vmatpush.msra.mxu0 0.0
    %81 = vmatpush.msra.mxu0 0.0
    %82 = vmatpush.msra.mxu0 0.0
    %83 = vmatpush.msra.mxu0 0.0
    %84 = vmatpush.msra.mxu0 0.0
    %85 = vmatpush.msra.mxu0 0.0
    %86 = vmatpush.msra.mxu0 0.0
    %87 = vmatpush.msra.mxu0 0.0
    %88 = vmatpush.msra.mxu0 0.0
    %89 = vmatpush.msra.mxu0 0.0
    %90 = vmatpush.msra.mxu0 0.0
    %91 = vmatpush.msra.mxu0 0.0
    %92 = vmatpush.msra.mxu0 0.0
    %93 = vmatpush.msra.mxu0 0.0
    %94 = vmatpush.msra.mxu0 %v77
    %95 = vmatmul.f32.gmra.mxu0 %v64
    %v96 = vpop.f32.mrf.mxu0
    %v97 = vadd.f32 %v45, %v96
    %98 = vmatmul.f32.gmra.mxu0 %v67
    %v99 = vpop.f32.mrf.mxu0
    %v100 = vadd.f32 %v50, %v99
    %101 = vmatmul.f32.gmra.mxu0 %v70
    %v102 = vpop.f32.mrf.mxu0
    %v103 = vadd.f32 %v55, %v102
    %104 = vmatmul.f32.gmra.mxu0 %v73
    %v105 = vpop.f32.mrf.mxu0
    %v106 = vadd.f32 %v60, %v105
    %107 = vdwg.mxu0
    %v108 = vmax.f32 %v97, 0.0
    %v109 = vmax.f32 %v100, 0.0
    %v110 = vmax.f32 %v103, 0.0
    %v111 = vmax.f32 %v106, 0.0
    %v112 = vld [vmem:[%s3] sm:$0xff]
    %v113 = vld [vmem:[%s3 + $0x8] sm:$0xff]
    %v114 = vld [vmem:[%s3 + $0x10] sm:$0xff]
    %v115 = vld [vmem:[%s3 + $0x18] sm:$0xff]
    %v116 = vld [vmem:[%s3 + $0x20] sm:$0xff]
    %v117 = vld [vmem:[%s3 + $0x28] sm:$0xff]
    %v118 = vld [vmem:[%s3 + $0x30] sm:$0xff]
    %v119 = vld [vmem:[%s3 + $0x38] sm:$0xff]
    %v120 = vld [vmem:[%s4] sm:$0xff]
    %v121 = vld [vmem:[%s4 + $0x8] sm:$0xff]
    %v122 = vld [vmem:[%s4 + $0x10] sm:$0xff]
    %v123 = vld [vmem:[%s4 + $0x18] sm:$0xff]
    %v124 = vld [vmem:[%s4 + $0x20] sm:$0xff]
    %v125 = vld [vmem:[%s4 + $0x28] sm:$0xff]
    %v126 = vld [vmem:[%s4 + $0x30] sm:$0xff]
    %v127 = vld [vmem:[%s4 + $0x38] sm:$0xff]
    %129 = vset.pattern.permute.xlu0 0
    %130 = vperm.xlu0 %129, %v120
    %v131 = vpop.permute.xlu0 %130
    %134 = vset.pattern.permute.xlu0 0
    %135 = vperm.xlu0 %134, %v121
    %v136 = vpop.permute.xlu0 %135
    %139 = vset.pattern.permute.xlu0 0
    %140 = vperm.xlu0 %139, %v122
    %v141 = vpop.permute.xlu0 %140
    %144 = vset.pattern.permute.xlu0 0
    %145 = vperm.xlu0 %144, %v123
    %v146 = vpop.permute.xlu0 %145
    %149 = vset.pattern.permute.xlu0 0
    %150 = vperm.xlu0 %149, %v124
    %v151 = vpop.permute.xlu0 %150
    %154 = vset.pattern.permute.xlu0 0
    %155 = vperm.xlu0 %154, %v125
    %v156 = vpop.permute.xlu0 %155
    %159 = vset.pattern.permute.xlu0 0
    %160 = vperm.xlu0 %159, %v126
    %v161 = vpop.permute.xlu0 %160
    %164 = vset.pattern.permute.xlu0 0
    %165 = vperm.xlu0 %164, %v127
    %v166 = vpop.permute.xlu0 %165
    %vm168 = vcmask 261120
    %v170 = vsel %vm168, %v112, 0
    %v173 = vsel %vm168, %v113, 0
    %v176 = vsel %vm168, %v114, 0
    %v179 = vsel %vm168, %v115, 0
    %v182 = vsel %vm168, %v116, 0
    %v185 = vsel %vm168, %v117, 0
    %v188 = vsel %vm168, %v118, 0
    %v191 = vsel %vm168, %v119, 0
    %193 = vmatpush.msra.mxu0 0.0
    %194 = vmatpush.msra.mxu0 0.0
    %195 = vmatpush.msra.mxu0 0.0
    %196 = vmatpush.msra.mxu0 0.0
    %197 = vmatpush.msra.mxu0 0.0
    %198 = vmatpush.msra.mxu0 0.0
    %199 = vmatpush.msra.mxu0 0.0
    %200 = vmatpush.msra.mxu0 0.0
    %201 = vmatpush.msra.mxu0 0.0
    %202 = vmatpush.msra.mxu0 0.0
    %203 = vmatpush.msra.mxu0 0.0
    %204 = vmatpush.msra.mxu0 0.0
    %205 = vmatpush.msra.mxu0 %v111
    %206 = vmatpush.msra.mxu0 %v110
    %207 = vmatpush.msra.mxu0 %v109
    %208 = vmatpush.msra.mxu0 %v108
    %209 = vmatmul.f32.gmra.mxu0 %v170
    %v210 = vpop.f32.mrf.mxu0
    %v211 = vadd.f32 %v131, %v210
    %212 = vmatmul.f32.gmra.mxu0 %v173
    %v213 = vpop.f32.mrf.mxu0
    %v214 = vadd.f32 %v136, %v213
    %215 = vmatmul.f32.gmra.mxu0 %v176
    %v216 = vpop.f32.mrf.mxu0
    %v217 = vadd.f32 %v141, %v216
    %218 = vmatmul.f32.gmra.mxu0 %v179
    %v219 = vpop.f32.mrf.mxu0
    %v220 = vadd.f32 %v146, %v219
    %221 = vmatmul.f32.gmra.mxu0 %v182
    %v222 = vpop.f32.mrf.mxu0
    %v223 = vadd.f32 %v151, %v222
    %224 = vmatmul.f32.gmra.mxu0 %v185
    %v225 = vpop.f32.mrf.mxu0
    %v226 = vadd.f32 %v156, %v225
    %227 = vmatmul.f32.gmra.mxu0 %v188
    %v228 = vpop.f32.mrf.mxu0
    %v229 = vadd.f32 %v161, %v228
    %230 = vmatmul.f32.gmra.mxu0 %v191
    %v231 = vpop.f32.mrf.mxu0
    %v232 = vadd.f32 %v166, %v231
    %233 = vdwg.mxu0
    %v234 = vmax.f32 %v211, 0.0
    %v235 = vmax.f32 %v214, 0.0
    %v236 = vmax.f32 %v217, 0.0
    %v237 = vmax.f32 %v220, 0.0
    %v238 = vmax.f32 %v223, 0.0
    %v239 = vmax.f32 %v226, 0.0
    %v240 = vmax.f32 %v229, 0.0
    %v241 = vmax.f32 %v232, 0.0
    %v242 = vld [vmem:[%s5] sm:$0xff]
    %v243 = vld [vmem:[%s5 + $0x8] sm:$0xff]
    %v244 = vld [vmem:[%s5 + $0x10] sm:$0xff]
    %v245 = vld [vmem:[%s5 + $0x18] sm:$0xff]
    %v246 = vld [vmem:[%s6] sm:$0xff]
    %v247 = vld [vmem:[%s6 + $0x8] sm:$0xff]
    %v248 = vld [vmem:[%s6 + $0x10] sm:$0xff]
    %v249 = vld [vmem:[%s6 + $0x18] sm:$0xff]
    %251 = vset.pattern.permute.xlu0 0
    %252 = vperm.xlu0 %251, %v246
    %v253 = vpop.permute.xlu0 %252
    %256 = vset.pattern.permute.xlu0 0
    %257 = vperm.xlu0 %256, %v247
    %v258 = vpop.permute.xlu0 %257
    %261 = vset.pattern.permute.xlu0 0
    %262 = vperm.xlu0 %261, %v248
    %v263 = vpop.permute.xlu0 %262
    %266 = vset.pattern.permute.xlu0 0
    %267 = vperm.xlu0 %266, %v249
    %v268 = vpop.permute.xlu0 %267
    %vm270 = vcmask 523264
    %v272 = vsel %vm270, %v242, 0
    %v275 = vsel %vm270, %v243, 0
    %v278 = vsel %vm270, %v244, 0
    %v281 = vsel %vm270, %v245, 0
    %283 = vmatpush.msra.mxu0 0.0
    %284 = vmatpush.msra.mxu0 0.0
    %285 = vmatpush.msra.mxu0 0.0
    %286 = vmatpush.msra.mxu0 0.0
    %287 = vmatpush.msra.mxu0 0.0
    %288 = vmatpush.msra.mxu0 0.0
    %289 = vmatpush.msra.mxu0 0.0
    %290 = vmatpush.msra.mxu0 0.0
    %291 = vmatpush.msra.mxu0 %v241
    %292 = vmatpush.msra.mxu0 %v240
    %293 = vmatpush.msra.mxu0 %v239
    %294 = vmatpush.msra.mxu0 %v238
    %295 = vmatpush.msra.mxu0 %v237
    %296 = vmatpush.msra.mxu0 %v236
    %297 = vmatpush.msra.mxu0 %v235
    %298 = vmatpush.msra.mxu0 %v234
    %299 = vmatmul.f32.gmra.mxu0 %v272
    %v300 = vpop.f32.mrf.mxu0
    %v301 = vadd.f32 %v253, %v300
    %302 = vmatmul.f32.gmra.mxu0 %v275
    %v303 = vpop.f32.mrf.mxu0
    %v304 = vadd.f32 %v258, %v303
    %305 = vmatmul.f32.gmra.mxu0 %v278
    %v306 = vpop.f32.mrf.mxu0
    %v307 = vadd.f32 %v263, %v306
    %308 = vmatmul.f32.gmra.mxu0 %v281
    %v309 = vpop.f32.mrf.mxu0
    %v310 = vadd.f32 %v268, %v309
    %311 = vdwg.mxu0
    %v312 = vmax.f32 %v301, 0.0
    %v313 = vmax.f32 %v304, 0.0
    %v314 = vmax.f32 %v307, 0.0
    %v315 = vmax.f32 %v310, 0.0
    %v316 = vld [vmem:[%s7] sm:$0xf]
    %v317 = vld [vmem:[%s8] sm:$0xf]
    %319 = vset.pattern.permute.xlu0 0
    %320 = vperm.xlu0 %319, %v317
    %v321 = vpop.permute.xlu0 %320
    %v324 = vsel %vm168, %v316, 0
    %326 = vmatpush.msra.mxu0 0.0
    %327 = vmatpush.msra.mxu0 0.0
    %328 = vmatpush.msra.mxu0 0.0
    %329 = vmatpush.msra.mxu0 0.0
    %330 = vmatpush.msra.mxu0 0.0
    %331 = vmatpush.msra.mxu0 0.0
    %332 = vmatpush.msra.mxu0 0.0
    %333 = vmatpush.msra.mxu0 0.0
    %334 = vmatpush.msra.mxu0 0.0
    %335 = vmatpush.msra.mxu0 0.0
    %336 = vmatpush.msra.mxu0 0.0
    %337 = vmatpush.msra.mxu0 0.0
    %338 = vmatpush.msra.mxu0 %v315
    %339 = vmatpush.msra.mxu0 %v314
    %340 = vmatpush.msra.mxu0 %v313
    %341 = vmatpush.msra.mxu0 %v312
    %342 = vmatmul.f32.gmra.mxu0 %v324
    %v343 = vpop.f32.mrf.mxu0
    %v344 = vadd.f32 %v321, %v343
    %345 = vdwg.mxu0
    %346 = vst [vmem:[#allocation2] sm:$0xf] %v344
    // Predicated region
    $region38: #{tpu_custom_call.1} parent=1 // pred_check
      _
    $region39: #{tpu_custom_call.1} parent=1 // pred_check_branch
      %348 = sbr.rel (0) target = $region41
    $region40: #{tpu_custom_call.1} parent=1 // pred_region
      %350 = vsyncadd [#allocation3], 0
      %s352 = sshll.u32 [#allocation2], 4
      %s353 = int_to_ptr.vmem [resolvable:$true] %s352
      %s354 = sshll.u32 %s9, 4
      %s355 = int_to_ptr.hbm [resolvable:$true] %s354
      %357 = dma.vmem_to_hbm [thread:$0]  %s353, 64, %s355, [#allocation3]
    $region41: #{tpu_custom_call.1} parent=1 // pred_fallthru
      _
    // Predicated region
    $region42: #{tpu_custom_call.1} parent=1 // pred_check
      _
    $region43: #{tpu_custom_call.1} parent=1 // pred_check_branch
      %359 = sbr.rel (0) target = $region45
    $region44: #{tpu_custom_call.1} parent=1 // pred_region
      %361 = dma.done [#allocation3], 64
    $region45: #{tpu_custom_call.1} parent=1 // pred_fallthru
      _
    %362 = vsyncpa [#allocation3], 1

</llo_original>
